<compile_context>
chip_gen: v7x
topology: tpu7x:2x2x1
jax: 0.10.0
libtpu: 0.0.40
codegen_flags: <defaults>
</compile_context>

<pallas_src>
import functools

import jax
import jax.numpy as jnp
from jax import lax
from jax.experimental import pallas as pl
from jax.experimental.pallas import tpu as pltpu

LANE = 128     # TPU lane width  — pad feature dims to this for lane-dense math/stores.
SUBLANE = 8    # f32 sublane count — coalesce output stores to multiples of this.


def _group_timesteps(seq_len, batch):
    """Timesteps per store-group.

    batch == 1  : smallest g dividing seq_len with g % 8 == 0 (one f32 vreg of rows
                  per group -> unmasked (8,128) stores); falls back to the whole
                  sequence (single store) if seq_len has no such divisor.
    batch != 1  : 1 (per-step stores; already unmasked full tiles when batch % 8 == 0.
                  Cross-timestep row coalescing for 1 < batch < 8 would need a
                  sublane-offset insert — not needed for this module's batch=1).
    """
    if batch != 1:
        return 1
    for g in range(1, seq_len + 1):
        if seq_len % g == 0 and g % SUBLANE == 0:
            return g
    return seq_len


def rnn_kernel(x2d_ref, wih_t_ref, whh_t_ref, b_ref, out_ref, *,
               seq_len, batch, group_t):
    """Whole-sequence RNN kernel (sequence resident in VMEM).

    x2d_ref   : (seq_len*batch, I_PAD)   flattened, lane-padded input
    wih_t_ref : (I_PAD, H_PAD)           W_ih^T, zero-padded
    whh_t_ref : (H_PAD, H_PAD)           W_hh^T, zero-padded
    b_ref     : (1, H_PAD)               b_ih + b_hh, zero-padded
    out_ref   : (seq_len*batch, H_PAD)   hidden states for every timestep
    """
    h_pad = whh_t_ref.shape[1]
    rows_g = group_t * batch              # rows (sublanes) per load/store group
    num_groups = seq_len // group_t       # _group_timesteps guarantees divisibility

    # Hoisted input projection + fused bias: ONE lane-dense MXU matmul over all
    # seq_len*batch rows, written straight into out_ref (full-tile stores). Keeping
    # `pre` in VMEM — not in vregs across the recurrence — avoids spills; VMEM loads
    # (3 vld/cycle) are far cheaper than spill stores on the serial chain.
    out_ref[...] = (
        jnp.dot(x2d_ref[...], wih_t_ref[...], preferred_element_type=jnp.float32)
        + b_ref[...]
    )

    # Recurrent weights loaded once and reused every step. The MXU RHS push for
    # whh_t should be hoisted out of the loop by the scheduler; explicit staging via
    # pltpu.matmul_push_rhs / matmul_acc_lhs is the next lever if a Mosaic dump shows
    # per-step pushes dominating the serial chain.
    whh_t = whh_t_ref[...]

    # Row-index iota for the VPU insert of each new h row into the group block
    # (hoisted: JAX does not CSE broadcast_in_dim inside loops).
    row_ids = (lax.broadcasted_iota(jnp.int32, (rows_g, h_pad), 0)
               if group_t > 1 else None)

    def run_group(pre_g, h):
        if group_t == 1:
            h = jnp.tanh(pre_g + jnp.dot(h, whh_t,
                                         preferred_element_type=jnp.float32))
            return h, h
        # batch == 1 here by construction of group_t.
        block = pre_g
        for t in range(group_t):
            pre_t = pre_g[t * batch:(t + 1) * batch, :]          # static slice
            h = jnp.tanh(pre_t + jnp.dot(h, whh_t,
                                         preferred_element_type=jnp.float32))
            # One-vreg VPU select drops h into its sublane slot; stays off the
            # MXU/vst critical path and overlaps the next step's recurrent matmul.
            block = jnp.where(row_ids == t, h, block)
        return block, h

    # h_0 = 0 (matches torch.zeros hidden init in forward()).
    h = jnp.zeros((batch, h_pad), jnp.float32)

    if num_groups <= 4:
        # Few groups: static trace-time unroll.
        for g in range(num_groups):
            start = g * rows_g
            pre_g = out_ref[start:start + rows_g, :]             # one coalesced load
            block, h = run_group(pre_g, h)
            out_ref[start:start + rows_g, :] = block             # one coalesced store
    else:
        # Long sequences: modestly unrolled fori_loop bounds vreg live ranges and
        # code size while keeping scheduling visibility across iterations.
        def body(g, h):
            start = g * rows_g
            if rows_g % SUBLANE == 0:
                start = pl.multiple_of(start, rows_g)
            pre_g = out_ref[pl.ds(start, rows_g), :]
            block, h = run_group(pre_g, h)
            out_ref[pl.ds(start, rows_g), :] = block
            return h
        h = lax.fori_loop(0, num_groups, body, h, unroll=min(num_groups, 8))


def model_rnn_forward(x, w_ih, w_hh, b_ih, b_hh, *, return_padded=False):
    """x: (seq_len, batch, input_size) -> (seq_len * batch, hidden_size).

    return_padded=True returns the lane-padded (seq_len*batch, H_PAD) block directly,
    avoiding the extra HBM read+write of the trailing slice when the consumer can
    tolerate the zero padding.
    """
    seq_len, batch, input_size = x.shape
    hidden_size = w_ih.shape[0]

    # Pad feature dims up to the 128-lane width. Zero padding is exact: padded
    # pre-activation columns are 0, tanh(0)=0, and padded W_hh^T rows are 0, so the
    # padding never leaks into real columns.
    i_pad = ((input_size + LANE - 1) // LANE) * LANE
    h_pad = ((hidden_size + LANE - 1) // LANE) * LANE

    x32 = jnp.asarray(x, jnp.float32)
    x2d = jnp.pad(x32, ((0, 0), (0, 0), (0, i_pad - input_size))).reshape(
        seq_len * batch, i_pad)

    # NOTE(v6e/v7x): for larger models cast wih_t/whh_t (and x2d) to bf16 here (keep
    # preferred_element_type=f32 in the kernel) — fewer MXU passes per serial step and
    # half the weight VMEM. Kept f32 for exact parity with the torch f32 module.
    wih_t = jnp.pad(jnp.asarray(w_ih, jnp.float32).T,
                    ((0, i_pad - input_size), (0, h_pad - hidden_size)))
    whh_t = jnp.pad(jnp.asarray(w_hh, jnp.float32).T,
                    ((0, h_pad - hidden_size), (0, h_pad - hidden_size)))
    b = jnp.pad(jnp.asarray(b_ih, jnp.float32) + jnp.asarray(b_hh, jnp.float32),
                (0, h_pad - hidden_size)).reshape(1, h_pad)

    group_t = _group_timesteps(seq_len, batch)
    kernel = functools.partial(rnn_kernel, seq_len=seq_len, batch=batch,
                               group_t=group_t)

    rows = seq_len * batch
    resident_bytes = 4 * (rows * i_pad + i_pad * h_pad + h_pad * h_pad
                          + h_pad + rows * h_pad)
    # This toy problem is tiny. For long sequences (resident_bytes approaching half
    # the scoped VMEM — cut over EARLIER on v7x: 64 MiB physical / 32 MiB default
    # scoped) switch to a time-chunked grid: x/out blocked over time, weights with a
    # constant index_map, h carried in persistent VMEM scratch, time axis marked
    # "arbitrary", and the per-chunk projection computed in-kernel (never materialize
    # `pre` to HBM), relying on BlockSpec double-buffering / pl.Buffered(3) on the x
    # block to hide DMA behind the serial recurrence. On v7x, the hoisted projection
    # can additionally be split across the 2 TensorCores with a parallel grid axis.
    vmem_limit = min(max(4 * resident_bytes, 16 * 1024 * 1024), 32 * 1024 * 1024)

    out_padded = pl.pallas_call(
        kernel,
        out_shape=jax.ShapeDtypeStruct((rows, h_pad), jnp.float32),
        grid=(1,),
        in_specs=[
            pl.BlockSpec((rows, i_pad), lambda i: (0, 0)),
            pl.BlockSpec((i_pad, h_pad), lambda i: (0, 0)),
            pl.BlockSpec((h_pad, h_pad), lambda i: (0, 0)),
            pl.BlockSpec((1, h_pad), lambda i: (0, 0)),
        ],
        out_specs=pl.BlockSpec((rows, h_pad), lambda i: (0, 0)),
        compiler_params=pltpu.CompilerParams(
            dimension_semantics=("arbitrary",),
            vmem_limit_bytes=vmem_limit),
    )(x2d, wih_t, whh_t, b)

    if return_padded:
        return out_padded
    # Module parity: out.view(-1, hidden_size). Consumers that tolerate lane padding
    # should use return_padded=True to skip this extra HBM round trip.
    return out_padded[:, :hidden_size]


def rnn_reference(x, w_ih, w_hh, b_ih, b_hh):
    """Pure-JAX reference (same math as torch.nn.RNN with tanh)."""
    seq_len, batch, _ = x.shape
    hidden_size = w_ih.shape[0]
    h0 = jnp.zeros((batch, hidden_size), jnp.float32)

    def step(h, x_t):
        h_new = jnp.tanh(x_t @ w_ih.T + b_ih + h @ w_hh.T + b_hh)
        return h_new, h_new

    _, outs = lax.scan(step, h0, x)
    return outs.reshape(seq_len * batch, hidden_size)


if __name__ == "__main__":
    # Module defaults: input_size=4, hidden_size=4, batch_size=1, num_layers=1.
    seq_len, batch, input_size, hidden_size = 8, 1, 4, 4

    key = jax.random.PRNGKey(0)
    kx, k1, k2, k3, k4 = jax.random.split(key, 5)

    # Deterministic init mimicking nn.RNN's U(-1/sqrt(hidden), 1/sqrt(hidden)).
    bound = 1.0 / float(hidden_size) ** 0.5
    x = jax.random.normal(kx, (seq_len, batch, input_size), jnp.float32)
    w_ih = jax.random.uniform(k1, (hidden_size, input_size), jnp.float32, -bound, bound)
    w_hh = jax.random.uniform(k2, (hidden_size, hidden_size), jnp.float32, -bound, bound)
    b_ih = jax.random.uniform(k3, (hidden_size,), jnp.float32, -bound, bound)
    b_hh = jax.random.uniform(k4, (hidden_size,), jnp.float32, -bound, bound)

    out = model_rnn_forward(x, w_ih, w_hh, b_ih, b_hh)
    out = jax.block_until_ready(out)

    ref = rnn_reference(x, w_ih, w_hh, b_ih, b_hh)
    assert out.shape == (seq_len * batch, hidden_size), out.shape
    assert jnp.allclose(out, ref, atol=1e-5, rtol=1e-5), "mismatch vs JAX reference"

    print("KERNEL_OK")
</pallas_src>

<mosaic_0001>
module attributes {stable_mosaic.version = 11 : i64} {
  func.func @rnn_kernel(%arg0: i32, %arg1: memref<8x128xf32, #tpu.memory_space<vmem>>, %arg2: memref<128x128xf32, #tpu.memory_space<vmem>>, %arg3: memref<128x128xf32, #tpu.memory_space<vmem>>, %arg4: memref<1x128xf32, #tpu.memory_space<vmem>>, %arg5: memref<8x128xf32, #tpu.memory_space<vmem>>) attributes {dimension_semantics = [#tpu.dimension_semantics<arbitrary>], iteration_bounds = array<i64: 1>, scalar_prefetch = 0 : i64, scratch_operands = 0 : i64, tpu.core_type = #tpu.core_type<tc>, window_params = [{pipeline_mode = #tpu.pipeline_mode<synchronous>, transform_indices = @transform_0, window_bounds = array<i64: 8, 128>}, {pipeline_mode = #tpu.pipeline_mode<synchronous>, transform_indices = @transform_1, window_bounds = array<i64: 128, 128>}, {pipeline_mode = #tpu.pipeline_mode<synchronous>, transform_indices = @transform_2, window_bounds = array<i64: 128, 128>}, {pipeline_mode = #tpu.pipeline_mode<synchronous>, transform_indices = @transform_3, window_bounds = array<i64: 1, 128>}, {pipeline_mode = #tpu.pipeline_mode<synchronous>, transform_indices = @transform_4, window_bounds = array<i64: 8, 128>}]} {
    %c0 = arith.constant 0 : index
    %c0_0 = arith.constant 0 : index
    %0 = vector.load %arg1[%c0, %c0_0] : memref<8x128xf32, #tpu.memory_space<vmem>>, vector<8x128xf32>
    %c0_1 = arith.constant 0 : index
    %c0_2 = arith.constant 0 : index
    %1 = vector.load %arg2[%c0_1, %c0_2] : memref<128x128xf32, #tpu.memory_space<vmem>>, vector<128x128xf32>
    %cst = arith.constant dense<0.000000e+00> : vector<8x128xf32>
    %2 = tpu.matmul %0, %1, %cst {dimension_numbers = #tpu.dot_dimension_numbers<[1], [0], [0], [1], [0, 0, 1, 1], [], []>} : vector<8x128xf32>, vector<128x128xf32>, vector<8x128xf32> -> vector<8x128xf32>
    %c0_3 = arith.constant 0 : index
    %c0_4 = arith.constant 0 : index
    %3 = vector.load %arg4[%c0_3, %c0_4] : memref<1x128xf32, #tpu.memory_space<vmem>>, vector<1x128xf32>
    %4 = vector.broadcast %3 : vector<1x128xf32> to vector<8x128xf32>
    %5 = arith.addf %2, %4 : vector<8x128xf32>
    %c0_5 = arith.constant 0 : index
    %c0_6 = arith.constant 0 : index
    %6 = vector.load %arg5[%c0_5, %c0_6] : memref<8x128xf32, #tpu.memory_space<vmem>>, vector<8x128xf32>
    tpu.vector_store %arg5[%c0_5, %c0_6], %5 {strides = array<i32>} : memref<8x128xf32, #tpu.memory_space<vmem>>, vector<8x128xf32>,
    %c0_7 = arith.constant 0 : index
    %c0_8 = arith.constant 0 : index
    %7 = vector.load %arg3[%c0_7, %c0_8] : memref<128x128xf32, #tpu.memory_space<vmem>>, vector<128x128xf32>
    %8 = tpu.iota {dimensions = array<i32: 0>} : vector<8x128xi32>
    %cst_9 = arith.constant 0.000000e+00 : f32
    %9 = vector.broadcast %cst_9 : f32 to vector<1x128xf32>
    %c0_10 = arith.constant 0 : index
    %c0_11 = arith.constant 0 : index
    %10 = vector.load %arg5[%c0_10, %c0_11] : memref<8x128xf32, #tpu.memory_space<vmem>>, vector<8x128xf32>
    %11 = vector.extract_strided_slice %10 {offsets = [0, 0], sizes = [1, 128], strides = [1, 1]} : vector<8x128xf32> to vector<1x128xf32>
    %cst_12 = arith.constant dense<0.000000e+00> : vector<1x128xf32>
    %12 = tpu.matmul %9, %7, %cst_12 {dimension_numbers = #tpu.dot_dimension_numbers<[1], [0], [0], [1], [0, 0, 1, 1], [], []>} : vector<1x128xf32>, vector<128x128xf32>, vector<1x128xf32> -> vector<1x128xf32>
    %13 = arith.addf %11, %12 : vector<1x128xf32>
    %14 = math.tanh %13 : vector<1x128xf32>
    %c0_i32 = arith.constant 0 : i32
    %15 = vector.broadcast %c0_i32 : i32 to vector<8x128xi32>
    %16 = arith.cmpi eq, %8, %15 : vector<8x128xi32>
    %17 = vector.shape_cast %14 : vector<1x128xf32> to vector<1x128xf32>
    %18 = vector.broadcast %17 : vector<1x128xf32> to vector<8x128xf32>
    %19 = arith.select %16, %18, %10 : vector<8x128xi1>, vector<8x128xf32>
    %20 = vector.extract_strided_slice %10 {offsets = [1, 0], sizes = [1, 128], strides = [1, 1]} : vector<8x128xf32> to vector<1x128xf32>
    %cst_13 = arith.constant dense<0.000000e+00> : vector<1x128xf32>
    %21 = tpu.matmul %14, %7, %cst_13 {dimension_numbers = #tpu.dot_dimension_numbers<[1], [0], [0], [1], [0, 0, 1, 1], [], []>} : vector<1x128xf32>, vector<128x128xf32>, vector<1x128xf32> -> vector<1x128xf32>
    %22 = arith.addf %20, %21 : vector<1x128xf32>
    %23 = math.tanh %22 : vector<1x128xf32>
    %c1_i32 = arith.constant 1 : i32
    %24 = vector.broadcast %c1_i32 : i32 to vector<8x128xi32>
    %25 = arith.cmpi eq, %8, %24 : vector<8x128xi32>
    %26 = vector.shape_cast %23 : vector<1x128xf32> to vector<1x128xf32>
    %27 = vector.broadcast %26 : vector<1x128xf32> to vector<8x128xf32>
    %28 = arith.select %25, %27, %19 : vector<8x128xi1>, vector<8x128xf32>
    %29 = vector.extract_strided_slice %10 {offsets = [2, 0], sizes = [1, 128], strides = [1, 1]} : vector<8x128xf32> to vector<1x128xf32>
    %cst_14 = arith.constant dense<0.000000e+00> : vector<1x128xf32>
    %30 = tpu.matmul %23, %7, %cst_14 {dimension_numbers = #tpu.dot_dimension_numbers<[1], [0], [0], [1], [0, 0, 1, 1], [], []>} : vector<1x128xf32>, vector<128x128xf32>, vector<1x128xf32> -> vector<1x128xf32>
    %31 = arith.addf %29, %30 : vector<1x128xf32>
    %32 = math.tanh %31 : vector<1x128xf32>
    %c2_i32 = arith.constant 2 : i32
    %33 = vector.broadcast %c2_i32 : i32 to vector<8x128xi32>
    %34 = arith.cmpi eq, %8, %33 : vector<8x128xi32>
    %35 = vector.shape_cast %32 : vector<1x128xf32> to vector<1x128xf32>
    %36 = vector.broadcast %35 : vector<1x128xf32> to vector<8x128xf32>
    %37 = arith.select %34, %36, %28 : vector<8x128xi1>, vector<8x128xf32>
    %38 = vector.extract_strided_slice %10 {offsets = [3, 0], sizes = [1, 128], strides = [1, 1]} : vector<8x128xf32> to vector<1x128xf32>
    %cst_15 = arith.constant dense<0.000000e+00> : vector<1x128xf32>
    %39 = tpu.matmul %32, %7, %cst_15 {dimension_numbers = #tpu.dot_dimension_numbers<[1], [0], [0], [1], [0, 0, 1, 1], [], []>} : vector<1x128xf32>, vector<128x128xf32>, vector<1x128xf32> -> vector<1x128xf32>
    %40 = arith.addf %38, %39 : vector<1x128xf32>
    %41 = math.tanh %40 : vector<1x128xf32>
    %c3_i32 = arith.constant 3 : i32
    %42 = vector.broadcast %c3_i32 : i32 to vector<8x128xi32>
    %43 = arith.cmpi eq, %8, %42 : vector<8x128xi32>
    %44 = vector.shape_cast %41 : vector<1x128xf32> to vector<1x128xf32>
    %45 = vector.broadcast %44 : vector<1x128xf32> to vector<8x128xf32>
    %46 = arith.select %43, %45, %37 : vector<8x128xi1>, vector<8x128xf32>
    %47 = vector.extract_strided_slice %10 {offsets = [4, 0], sizes = [1, 128], strides = [1, 1]} : vector<8x128xf32> to vector<1x128xf32>
    %cst_16 = arith.constant dense<0.000000e+00> : vector<1x128xf32>
    %48 = tpu.matmul %41, %7, %cst_16 {dimension_numbers = #tpu.dot_dimension_numbers<[1], [0], [0], [1], [0, 0, 1, 1], [], []>} : vector<1x128xf32>, vector<128x128xf32>, vector<1x128xf32> -> vector<1x128xf32>
    %49 = arith.addf %47, %48 : vector<1x128xf32>
    %50 = math.tanh %49 : vector<1x128xf32>
    %c4_i32 = arith.constant 4 : i32
    %51 = vector.broadcast %c4_i32 : i32 to vector<8x128xi32>
    %52 = arith.cmpi eq, %8, %51 : vector<8x128xi32>
    %53 = vector.shape_cast %50 : vector<1x128xf32> to vector<1x128xf32>
    %54 = vector.broadcast %53 : vector<1x128xf32> to vector<8x128xf32>
    %55 = arith.select %52, %54, %46 : vector<8x128xi1>, vector<8x128xf32>
    %56 = vector.extract_strided_slice %10 {offsets = [5, 0], sizes = [1, 128], strides = [1, 1]} : vector<8x128xf32> to vector<1x128xf32>
    %cst_17 = arith.constant dense<0.000000e+00> : vector<1x128xf32>
    %57 = tpu.matmul %50, %7, %cst_17 {dimension_numbers = #tpu.dot_dimension_numbers<[1], [0], [0], [1], [0, 0, 1, 1], [], []>} : vector<1x128xf32>, vector<128x128xf32>, vector<1x128xf32> -> vector<1x128xf32>
    %58 = arith.addf %56, %57 : vector<1x128xf32>
    %59 = math.tanh %58 : vector<1x128xf32>
    %c5_i32 = arith.constant 5 : i32
    %60 = vector.broadcast %c5_i32 : i32 to vector<8x128xi32>
    %61 = arith.cmpi eq, %8, %60 : vector<8x128xi32>
    %62 = vector.shape_cast %59 : vector<1x128xf32> to vector<1x128xf32>
    %63 = vector.broadcast %62 : vector<1x128xf32> to vector<8x128xf32>
    %64 = arith.select %61, %63, %55 : vector<8x128xi1>, vector<8x128xf32>
    %65 = vector.extract_strided_slice %10 {offsets = [6, 0], sizes = [1, 128], strides = [1, 1]} : vector<8x128xf32> to vector<1x128xf32>
    %cst_18 = arith.constant dense<0.000000e+00> : vector<1x128xf32>
    %66 = tpu.matmul %59, %7, %cst_18 {dimension_numbers = #tpu.dot_dimension_numbers<[1], [0], [0], [1], [0, 0, 1, 1], [], []>} : vector<1x128xf32>, vector<128x128xf32>, vector<1x128xf32> -> vector<1x128xf32>
    %67 = arith.addf %65, %66 : vector<1x128xf32>
    %68 = math.tanh %67 : vector<1x128xf32>
    %c6_i32 = arith.constant 6 : i32
    %69 = vector.broadcast %c6_i32 : i32 to vector<8x128xi32>
    %70 = arith.cmpi eq, %8, %69 : vector<8x128xi32>
    %71 = vector.shape_cast %68 : vector<1x128xf32> to vector<1x128xf32>
    %72 = vector.broadcast %71 : vector<1x128xf32> to vector<8x128xf32>
    %73 = arith.select %70, %72, %64 : vector<8x128xi1>, vector<8x128xf32>
    %74 = vector.extract_strided_slice %10 {offsets = [7, 0], sizes = [1, 128], strides = [1, 1]} : vector<8x128xf32> to vector<1x128xf32>
    %cst_19 = arith.constant dense<0.000000e+00> : vector<1x128xf32>
    %75 = tpu.matmul %68, %7, %cst_19 {dimension_numbers = #tpu.dot_dimension_numbers<[1], [0], [0], [1], [0, 0, 1, 1], [], []>} : vector<1x128xf32>, vector<128x128xf32>, vector<1x128xf32> -> vector<1x128xf32>
    %76 = arith.addf %74, %75 : vector<1x128xf32>
    %77 = math.tanh %76 : vector<1x128xf32>
    %c7_i32 = arith.constant 7 : i32
    %78 = vector.broadcast %c7_i32 : i32 to vector<8x128xi32>
    %79 = arith.cmpi eq, %8, %78 : vector<8x128xi32>
    %80 = vector.shape_cast %77 : vector<1x128xf32> to vector<1x128xf32>
    %81 = vector.broadcast %80 : vector<1x128xf32> to vector<8x128xf32>
    %82 = arith.select %79, %81, %73 : vector<8x128xi1>, vector<8x128xf32>
    %c0_20 = arith.constant 0 : index
    %c0_21 = arith.constant 0 : index
    %83 = vector.load %arg5[%c0_20, %c0_21] : memref<8x128xf32, #tpu.memory_space<vmem>>, vector<8x128xf32>
    tpu.vector_store %arg5[%c0_20, %c0_21], %82 {strides = array<i32>} : memref<8x128xf32, #tpu.memory_space<vmem>>, vector<8x128xf32>,
    return
  }
  func.func @transform_0(%arg0: i32) -> (i32, i32) {
    %c0_i32 = arith.constant 0 : i32
    %c0_i32_0 = arith.constant 0 : i32
    %c0_i32_1 = arith.constant 0 : i32
    return %c0_i32, %c0_i32_0 : i32, i32
  }
  func.func @transform_1(%arg0: i32) -> (i32, i32) {
    %c0_i32 = arith.constant 0 : i32
    %c0_i32_0 = arith.constant 0 : i32
    %c0_i32_1 = arith.constant 0 : i32
    return %c0_i32, %c0_i32_0 : i32, i32
  }
  func.func @transform_2(%arg0: i32) -> (i32, i32) {
    %c0_i32 = arith.constant 0 : i32
    %c0_i32_0 = arith.constant 0 : i32
    %c0_i32_1 = arith.constant 0 : i32
    return %c0_i32, %c0_i32_0 : i32, i32
  }
  func.func @transform_3(%arg0: i32) -> (i32, i32) {
    %c0_i32 = arith.constant 0 : i32
    %c0_i32_0 = arith.constant 0 : i32
    %c0_i32_1 = arith.constant 0 : i32
    return %c0_i32, %c0_i32_0 : i32, i32
  }
  func.func @transform_4(%arg0: i32) -> (i32, i32) {
    %c0_i32 = arith.constant 0 : i32
    %c0_i32_0 = arith.constant 0 : i32
    %c0_i32_1 = arith.constant 0 : i32
    return %c0_i32, %c0_i32_0 : i32, i32
  }
}

</mosaic_0001>

<llo_original>
// kernel: tpu_custom_call.1
$region0: #{tpu_custom_call.1}
  #allocation0 [shape = 'u32[]', space=smem, size = 0x4, offset = 0x4, fixed_abs, tag = 'smem constant byte address 0x4 - core index']
  #allocation1 [shape = 'u32[144,128]{1,0:T(1,128)}', space=vmem, size = 0x12000, scoped, tag = 'internal scratch']
  %s0 = inlined_call_operand.hbm [shape: f32[8,128], index: 0, kind: input, shape index: {}]
  %s1 = inlined_call_operand.hbm [shape: f32[128,128], index: 1, kind: input, shape index: {}]
  %s2 = inlined_call_operand.hbm [shape: f32[128,128], index: 2, kind: input, shape index: {}]
  %s3 = inlined_call_operand.vmem [shape: f32[1,128], index: 3, kind: input, shape index: {}]
  %s4 = inlined_call_operand.hbm [shape: f32[8,128], index: 4, kind: output, shape index: {}]
  %s5 = sld [smem:[#allocation0]]
  $region38: #{tpu_custom_call.1} parent=0
    _
  %s7 = ssub.s32 1, %s5
  %s8 = scalar_select 0, %s7, %s5
  $region1: #{tpu_custom_call.1} parent=0
    #allocation2 [shape = 'u8[4096]{0}', space=vmem, size = 0x1000, scoped, tag = 'input window, operand 0, single buffered']
    #allocation3 [shape = 's32[1]{0}', space=sflag, size = 0x4, scoped, tag = 'scoped memory for tpu_custom_call.1']
    #allocation4 [shape = 's32[1]{0}', space=sflag, size = 0x4, scoped, tag = 'scoped memory for tpu_custom_call.1']
    #allocation5 [shape = 'u8[65536]{0}', space=vmem, size = 0x10000, scoped, tag = 'input window, operand 1, single buffered']
    #allocation6 [shape = 's32[1]{0}', space=sflag, size = 0x4, scoped, tag = 'scoped memory for tpu_custom_call.1']
    #allocation7 [shape = 'u8[65536]{0}', space=vmem, size = 0x10000, scoped, tag = 'input window, operand 2, single buffered']
    #allocation8 [shape = 'u8[4096]{0}', space=vmem, size = 0x1000, scoped, tag = 'output window, operand 0, single buffered']
    %9 = vsyncpa [#allocation3], 0
    %10 = vsyncpa [#allocation6], 0
    %11 = vsyncpa [#allocation4], 0
    // Predicated region
    $region2: #{tpu_custom_call.1} parent=1 // pred_check
      _
    $region3: #{tpu_custom_call.1} parent=1 // pred_check_branch
      %13 = sbr.rel (0) target = $region5
    $region4: #{tpu_custom_call.1} parent=1 // pred_region
      %s15 = ssub.s32 128, 128
      %16 = vsyncadd [#allocation3], %s15
      %s18 = sshll.u32 [#allocation2], 4
      %s19 = int_to_ptr.vmem [resolvable:$true] %s18
      %21 = dma.hbm_to_vmem [thread:$0]  %s0, 128, %s19, [#allocation3]
    $region5: #{tpu_custom_call.1} parent=1 // pred_fallthru
      _
    // Predicated region
    $region6: #{tpu_custom_call.1} parent=1 // pred_check
      _
    $region7: #{tpu_custom_call.1} parent=1 // pred_check_branch
      %23 = sbr.rel (0) target = $region9
    $region8: #{tpu_custom_call.1} parent=1 // pred_region
      %s25 = ssub.s32 2048, 2048
      %26 = vsyncadd [#allocation6], %s25
      %s27 = sshll.u32 [#allocation5], 4
      %s28 = int_to_ptr.vmem [resolvable:$true] %s27
      %33 = dma.hbm_to_vmem [thread:$0]  %s1, 2048, %s28, [#allocation6], 128, 128, 8
    $region9: #{tpu_custom_call.1} parent=1 // pred_fallthru
      _
    // Predicated region
    $region10: #{tpu_custom_call.1} parent=1 // pred_check
      _
    $region11: #{tpu_custom_call.1} parent=1 // pred_check_branch
      %35 = sbr.rel (0) target = $region13
    $region12: #{tpu_custom_call.1} parent=1 // pred_region
      %s37 = ssub.s32 2048, 2048
      %38 = vsyncadd [#allocation6], %s37
      %s39 = sshll.u32 [#allocation7], 4
      %s40 = int_to_ptr.vmem [resolvable:$true] %s39
      %45 = dma.hbm_to_vmem [thread:$0]  %s2, 2048, %s40, [#allocation6], 128, 128, 8
    $region13: #{tpu_custom_call.1} parent=1 // pred_fallthru
      _
    // Predicated region
    $region14: #{tpu_custom_call.1} parent=1 // pred_check
      _
    $region15: #{tpu_custom_call.1} parent=1 // pred_check_branch
      %47 = sbr.rel (0) target = $region17
    $region16: #{tpu_custom_call.1} parent=1 // pred_region
      _
    $region17: #{tpu_custom_call.1} parent=1 // pred_fallthru
      _
    // Predicated region
    $region18: #{tpu_custom_call.1} parent=1 // pred_check
      _
    $region19: #{tpu_custom_call.1} parent=1 // pred_check_branch
      %49 = sbr.rel (0) target = $region21
    $region20: #{tpu_custom_call.1} parent=1 // pred_region
      %50 = dma.done [#allocation3], 128
    $region21: #{tpu_custom_call.1} parent=1 // pred_fallthru
      _
    // Predicated region
    $region22: #{tpu_custom_call.1} parent=1 // pred_check
      _
    $region23: #{tpu_custom_call.1} parent=1 // pred_check_branch
      %52 = sbr.rel (0) target = $region25
    $region24: #{tpu_custom_call.1} parent=1 // pred_region
      %53 = dma.done [#allocation6], 2048
    $region25: #{tpu_custom_call.1} parent=1 // pred_fallthru
      _
    // Predicated region
    $region26: #{tpu_custom_call.1} parent=1 // pred_check
      _
    $region27: #{tpu_custom_call.1} parent=1 // pred_check_branch
      %55 = sbr.rel (0) target = $region29
    $region28: #{tpu_custom_call.1} parent=1 // pred_region
      %56 = dma.done [#allocation6], 2048
    $region29: #{tpu_custom_call.1} parent=1 // pred_fallthru
      _
    %v57 = vld [vmem:[#allocation2] sm:$0xff]
    %v58 = vld [vmem:[#allocation5] sm:$0xff]
    %v59 = vld [vmem:[#allocation5 + $0x8] sm:$0xff]
    %v60 = vld [vmem:[#allocation5 + $0x10] sm:$0xff]
    %v61 = vld [vmem:[#allocation5 + $0x18] sm:$0xff]
    %v62 = vld [vmem:[#allocation5 + $0x20] sm:$0xff]
    %v63 = vld [vmem:[#allocation5 + $0x28] sm:$0xff]
    %v64 = vld [vmem:[#allocation5 + $0x30] sm:$0xff]
    %v65 = vld [vmem:[#allocation5 + $0x38] sm:$0xff]
    %v66 = vld [vmem:[#allocation5 + $0x40] sm:$0xff]
    %v67 = vld [vmem:[#allocation5 + $0x48] sm:$0xff]
    %v68 = vld [vmem:[#allocation5 + $0x50] sm:$0xff]
    %v69 = vld [vmem:[#allocation5 + $0x58] sm:$0xff]
    %v70 = vld [vmem:[#allocation5 + $0x60] sm:$0xff]
    %v71 = vld [vmem:[#allocation5 + $0x68] sm:$0xff]
    %v72 = vld [vmem:[#allocation5 + $0x70] sm:$0xff]
    %v73 = vld [vmem:[#allocation5 + $0x78] sm:$0xff]
    %v74 = vld [vmem:[%s3] sm:$0x1]
    %v76 = vlaneseq
    %v77 = vshrl.u32 %v76, 7
    %v78 = vsub.s32 0, %v77
    %v79 = vrot.slane %v74, %v78
    %81 = vmatprep.subr.mxu0 0.0
    %82 = vmatpush1.msra.mxu0 %v58
    %83 = vmatprep.subr.mxu0 0.0
    %84 = vmatpush1.msra.mxu0 %v59
    %85 = vmatprep.subr.mxu0 0.0
    %86 = vmatpush1.msra.mxu0 %v60
    %87 = vmatprep.subr.mxu0 0.0
    %88 = vmatpush1.msra.mxu0 %v61
    %89 = vmatprep.subr.mxu0 0.0
    %90 = vmatpush1.msra.mxu0 %v62
    %91 = vmatprep.subr.mxu0 0.0
    %92 = vmatpush1.msra.mxu0 %v63
    %93 = vmatprep.subr.mxu0 0.0
    %94 = vmatpush1.msra.mxu0 %v64
    %95 = vmatprep.subr.mxu0 0.0
    %96 = vmatpush1.msra.mxu0 %v65
    %97 = vmatprep.subr.mxu0 0.0
    %98 = vmatpush1.msra.mxu0 %v66
    %99 = vmatprep.subr.mxu0 0.0
    %100 = vmatpush1.msra.mxu0 %v67
    %101 = vmatprep.subr.mxu0 0.0
    %102 = vmatpush1.msra.mxu0 %v68
    %103 = vmatprep.subr.mxu0 0.0
    %104 = vmatpush1.msra.mxu0 %v69
    %105 = vmatprep.subr.mxu0 0.0
    %106 = vmatpush1.msra.mxu0 %v70
    %107 = vmatprep.subr.mxu0 0.0
    %108 = vmatpush1.msra.mxu0 %v71
    %109 = vmatprep.subr.mxu0 0.0
    %110 = vmatpush1.msra.mxu0 %v72
    %111 = vmatprep.subr.mxu0 0.0
    %112 = vmatpush1.msra.mxu0 %v73
    %113 = vmatprep.subr.mxu0 0.0
    %114 = vmatpush1.msra.mxu0 0.0
    %115 = vmatprep.subr.mxu0 0.0
    %116 = vmatpush1.msra.mxu0 0.0
    %117 = vmatprep.subr.mxu0 0.0
    %118 = vmatpush1.msra.mxu0 0.0
    %119 = vmatprep.subr.mxu0 0.0
    %120 = vmatpush1.msra.mxu0 0.0
    %121 = vmatprep.subr.mxu0 0.0
    %122 = vmatpush1.msra.mxu0 0.0
    %123 = vmatprep.subr.mxu0 0.0
    %124 = vmatpush1.msra.mxu0 0.0
    %125 = vmatprep.subr.mxu0 0.0
    %126 = vmatpush1.msra.mxu0 0.0
    %127 = vmatprep.subr.mxu0 0.0
    %128 = vmatpush1.msra.mxu0 0.0
    %129 = vmatprep.subr.mxu0 0.0
    %130 = vmatpush1.msra.mxu0 0.0
    %131 = vmatprep.subr.mxu0 0.0
    %132 = vmatpush1.msra.mxu0 0.0
    %133 = vmatprep.subr.mxu0 0.0
    %134 = vmatpush1.msra.mxu0 0.0
    %135 = vmatprep.subr.mxu0 0.0
    %136 = vmatpush1.msra.mxu0 0.0
    %137 = vmatprep.subr.mxu0 0.0
    %138 = vmatpush1.msra.mxu0 0.0
    %139 = vmatprep.subr.mxu0 0.0
    %140 = vmatpush1.msra.mxu0 0.0
    %141 = vmatprep.subr.mxu0 0.0
    %142 = vmatpush1.msra.mxu0 0.0
    %143 = vmatprep.subr.mxu0 0.0
    %144 = vmatpush1.msra.mxu0 0.0
    %145 = vmatprep.mubr.f32.mxu0 0.0
    %146 = vmatmul.mubr.f32.gmra.mrb[0].mxu0 %v57
    %v147 = vpop.f32.mrb[0].mxu0
    %v148 = vadd.f32 %v79, %v147
    %v149 = vpop.f32.mrb[0].mxu0
    %150 = vdwg.mxu0
    %151 = vst [vmem:[#allocation8] sm:$0xff] %v148
    %v152 = vld [vmem:[#allocation7] sm:$0xff]
    %v153 = vld [vmem:[#allocation7 + $0x8] sm:$0xff]
    %v154 = vld [vmem:[#allocation7 + $0x10] sm:$0xff]
    %v155 = vld [vmem:[#allocation7 + $0x18] sm:$0xff]
    %v156 = vld [vmem:[#allocation7 + $0x20] sm:$0xff]
    %v157 = vld [vmem:[#allocation7 + $0x28] sm:$0xff]
    %v158 = vld [vmem:[#allocation7 + $0x30] sm:$0xff]
    %v159 = vld [vmem:[#allocation7 + $0x38] sm:$0xff]
    %v160 = vld [vmem:[#allocation7 + $0x40] sm:$0xff]
    %v161 = vld [vmem:[#allocation7 + $0x48] sm:$0xff]
    %v162 = vld [vmem:[#allocation7 + $0x50] sm:$0xff]
    %v163 = vld [vmem:[#allocation7 + $0x58] sm:$0xff]
    %v164 = vld [vmem:[#allocation7 + $0x60] sm:$0xff]
    %v165 = vld [vmem:[#allocation7 + $0x68] sm:$0xff]
    %v166 = vld [vmem:[#allocation7 + $0x70] sm:$0xff]
    %v167 = vld [vmem:[#allocation7 + $0x78] sm:$0xff]
    %v168 = vlaneseq
    %v169 = vshrl.u32 %v168, 7
    %v170 = vld [vmem:[#allocation8] sm:$0xff]
    %171 = vmatprep.subr.mxu0 0.0
    %172 = vmatpush1.msra.mxu0 %v152
    %173 = vmatprep.subr.mxu0 0.0
    %174 = vmatpush1.msra.mxu0 %v153
    %175 = vmatprep.subr.mxu0 0.0
    %176 = vmatpush1.msra.mxu0 %v154
    %177 = vmatprep.subr.mxu0 0.0
    %178 = vmatpush1.msra.mxu0 %v155
    %179 = vmatprep.subr.mxu0 0.0
    %180 = vmatpush1.msra.mxu0 %v156
    %181 = vmatprep.subr.mxu0 0.0
    %182 = vmatpush1.msra.mxu0 %v157
    %183 = vmatprep.subr.mxu0 0.0
    %184 = vmatpush1.msra.mxu0 %v158
    %185 = vmatprep.subr.mxu0 0.0
    %186 = vmatpush1.msra.mxu0 %v159
    %187 = vmatprep.subr.mxu0 0.0
    %188 = vmatpush1.msra.mxu0 %v160
    %189 = vmatprep.subr.mxu0 0.0
    %190 = vmatpush1.msra.mxu0 %v161
    %191 = vmatprep.subr.mxu0 0.0
    %192 = vmatpush1.msra.mxu0 %v162
    %193 = vmatprep.subr.mxu0 0.0
    %194 = vmatpush1.msra.mxu0 %v163
    %195 = vmatprep.subr.mxu0 0.0
    %196 = vmatpush1.msra.mxu0 %v164
    %197 = vmatprep.subr.mxu0 0.0
    %198 = vmatpush1.msra.mxu0 %v165
    %199 = vmatprep.subr.mxu0 0.0
    %200 = vmatpush1.msra.mxu0 %v166
    %201 = vmatprep.subr.mxu0 0.0
    %202 = vmatpush1.msra.mxu0 %v167
    %203 = vmatprep.subr.mxu0 0.0
    %204 = vmatpush1.msra.mxu0 0.0
    %205 = vmatprep.subr.mxu0 0.0
    %206 = vmatpush1.msra.mxu0 0.0
    %207 = vmatprep.subr.mxu0 0.0
    %208 = vmatpush1.msra.mxu0 0.0
    %209 = vmatprep.subr.mxu0 0.0
    %210 = vmatpush1.msra.mxu0 0.0
    %211 = vmatprep.subr.mxu0 0.0
    %212 = vmatpush1.msra.mxu0 0.0
    %213 = vmatprep.subr.mxu0 0.0
    %214 = vmatpush1.msra.mxu0 0.0
    %215 = vmatprep.subr.mxu0 0.0
    %216 = vmatpush1.msra.mxu0 0.0
    %217 = vmatprep.subr.mxu0 0.0
    %218 = vmatpush1.msra.mxu0 0.0
    %219 = vmatprep.subr.mxu0 0.0
    %220 = vmatpush1.msra.mxu0 0.0
    %221 = vmatprep.subr.mxu0 0.0
    %222 = vmatpush1.msra.mxu0 0.0
    %223 = vmatprep.subr.mxu0 0.0
    %224 = vmatpush1.msra.mxu0 0.0
    %225 = vmatprep.subr.mxu0 0.0
    %226 = vmatpush1.msra.mxu0 0.0
    %227 = vmatprep.subr.mxu0 0.0
    %228 = vmatpush1.msra.mxu0 0.0
    %229 = vmatprep.subr.mxu0 0.0
    %230 = vmatpush1.msra.mxu0 0.0
    %231 = vmatprep.subr.mxu0 0.0
    %232 = vmatpush1.msra.mxu0 0.0
    %233 = vmatprep.subr.mxu0 0.0
    %234 = vmatpush1.msra.mxu0 0.0
    %235 = vmatprep.mubr.f32.mxu0 0.0
    %236 = vmatmul.mubr.f32.gmra.mrb[0].mxu0 0.0
    %v237 = vpop.f32.mrb[0].mxu0
    %v238 = vadd.f32 0.0, %v237
    %v239 = vpop.f32.mrb[0].mxu0
    %240 = vdwg.mxu0
    %v241 = vadd.f32 %v170, %v238
    %v242 = vtanh.pop %v241
    %vm243 = vcmp.eq.s32.totalorder %v169, 0
    %v244 = vlaneseq
    %v245 = vshrl.u32 %v244, 7
    %v246 = vsub.s32 0, %v245
    %v247 = vrot.slane %v242, %v246
    %v248 = vsel %vm243, %v247, %v170
    %249 = vmatprep.subr.mxu0 0.0
    %250 = vmatpush1.msra.mxu0 %v152
    %251 = vmatprep.subr.mxu0 0.0
    %252 = vmatpush1.msra.mxu0 %v153
    %253 = vmatprep.subr.mxu0 0.0
    %254 = vmatpush1.msra.mxu0 %v154
    %255 = vmatprep.subr.mxu0 0.0
    %256 = vmatpush1.msra.mxu0 %v155
    %257 = vmatprep.subr.mxu0 0.0
    %258 = vmatpush1.msra.mxu0 %v156
    %259 = vmatprep.subr.mxu0 0.0
    %260 = vmatpush1.msra.mxu0 %v157
    %261 = vmatprep.subr.mxu0 0.0
    %262 = vmatpush1.msra.mxu0 %v158
    %263 = vmatprep.subr.mxu0 0.0
    %264 = vmatpush1.msra.mxu0 %v159
    %265 = vmatprep.subr.mxu0 0.0
    %266 = vmatpush1.msra.mxu0 %v160
    %267 = vmatprep.subr.mxu0 0.0
    %268 = vmatpush1.msra.mxu0 %v161
    %269 = vmatprep.subr.mxu0 0.0
    %270 = vmatpush1.msra.mxu0 %v162
    %271 = vmatprep.subr.mxu0 0.0
    %272 = vmatpush1.msra.mxu0 %v163
    %273 = vmatprep.subr.mxu0 0.0
    %274 = vmatpush1.msra.mxu0 %v164
    %275 = vmatprep.subr.mxu0 0.0
    %276 = vmatpush1.msra.mxu0 %v165
    %277 = vmatprep.subr.mxu0 0.0
    %278 = vmatpush1.msra.mxu0 %v166
    %279 = vmatprep.subr.mxu0 0.0
    %280 = vmatpush1.msra.mxu0 %v167
    %281 = vmatprep.subr.mxu0 0.0
    %282 = vmatpush1.msra.mxu0 0.0
    %283 = vmatprep.subr.mxu0 0.0
    %284 = vmatpush1.msra.mxu0 0.0
    %285 = vmatprep.subr.mxu0 0.0
    %286 = vmatpush1.msra.mxu0 0.0
    %287 = vmatprep.subr.mxu0 0.0
    %288 = vmatpush1.msra.mxu0 0.0
    %289 = vmatprep.subr.mxu0 0.0
    %290 = vmatpush1.msra.mxu0 0.0
    %291 = vmatprep.subr.mxu0 0.0
    %292 = vmatpush1.msra.mxu0 0.0
    %293 = vmatprep.subr.mxu0 0.0
    %294 = vmatpush1.msra.mxu0 0.0
    %295 = vmatprep.subr.mxu0 0.0
    %296 = vmatpush1.msra.mxu0 0.0
    %297 = vmatprep.subr.mxu0 0.0
    %298 = vmatpush1.msra.mxu0 0.0
    %299 = vmatprep.subr.mxu0 0.0
    %300 = vmatpush1.msra.mxu0 0.0
    %301 = vmatprep.subr.mxu0 0.0
    %302 = vmatpush1.msra.mxu0 0.0
    %303 = vmatprep.subr.mxu0 0.0
    %304 = vmatpush1.msra.mxu0 0.0
    %305 = vmatprep.subr.mxu0 0.0
    %306 = vmatpush1.msra.mxu0 0.0
    %307 = vmatprep.subr.mxu0 0.0
    %308 = vmatpush1.msra.mxu0 0.0
    %309 = vmatprep.subr.mxu0 0.0
    %310 = vmatpush1.msra.mxu0 0.0
    %311 = vmatprep.subr.mxu0 0.0
    %312 = vmatpush1.msra.mxu0 0.0
    %313 = vmatprep.mubr.f32.mxu0 0.0
    %314 = vmatmul.mubr.f32.gmra.mrb[0].mxu0 %v242
    %v315 = vpop.f32.mrb[0].mxu0
    %v316 = vadd.f32 0.0, %v315
    %v317 = vpop.f32.mrb[0].mxu0
    %318 = vdwg.mxu0
    %v320 = vrot.slane %v316, 7
    %v322 = vadd.f32 %v170, %v320
    %v323 = vtanh.pop %v322
    %vm324 = vcmp.eq.s32.totalorder %v169, 1
    %v325 = vlaneseq
    %v326 = vshrl.u32 %v325, 7
    %v327 = vsub.s32 1, %v326
    %v328 = vrot.slane %v323, %v327
    %v329 = vsel %vm324, %v328, %v248
    %v331 = vrot.slane %v323, 1
    %333 = vmatprep.subr.mxu0 0.0
    %334 = vmatpush1.msra.mxu0 %v152
    %335 = vmatprep.subr.mxu0 0.0
    %336 = vmatpush1.msra.mxu0 %v153
    %337 = vmatprep.subr.mxu0 0.0
    %338 = vmatpush1.msra.mxu0 %v154
    %339 = vmatprep.subr.mxu0 0.0
    %340 = vmatpush1.msra.mxu0 %v155
    %341 = vmatprep.subr.mxu0 0.0
    %342 = vmatpush1.msra.mxu0 %v156
    %343 = vmatprep.subr.mxu0 0.0
    %344 = vmatpush1.msra.mxu0 %v157
    %345 = vmatprep.subr.mxu0 0.0
    %346 = vmatpush1.msra.mxu0 %v158
    %347 = vmatprep.subr.mxu0 0.0
    %348 = vmatpush1.msra.mxu0 %v159
    %349 = vmatprep.subr.mxu0 0.0
    %350 = vmatpush1.msra.mxu0 %v160
    %351 = vmatprep.subr.mxu0 0.0
    %352 = vmatpush1.msra.mxu0 %v161
    %353 = vmatprep.subr.mxu0 0.0
    %354 = vmatpush1.msra.mxu0 %v162
    %355 = vmatprep.subr.mxu0 0.0
    %356 = vmatpush1.msra.mxu0 %v163
    %357 = vmatprep.subr.mxu0 0.0
    %358 = vmatpush1.msra.mxu0 %v164
    %359 = vmatprep.subr.mxu0 0.0
    %360 = vmatpush1.msra.mxu0 %v165
    %361 = vmatprep.subr.mxu0 0.0
    %362 = vmatpush1.msra.mxu0 %v166
    %363 = vmatprep.subr.mxu0 0.0
    %364 = vmatpush1.msra.mxu0 %v167
    %365 = vmatprep.subr.mxu0 0.0
    %366 = vmatpush1.msra.mxu0 0.0
    %367 = vmatprep.subr.mxu0 0.0
    %368 = vmatpush1.msra.mxu0 0.0
    %369 = vmatprep.subr.mxu0 0.0
    %370 = vmatpush1.msra.mxu0 0.0
    %371 = vmatprep.subr.mxu0 0.0
    %372 = vmatpush1.msra.mxu0 0.0
    %373 = vmatprep.subr.mxu0 0.0
    %374 = vmatpush1.msra.mxu0 0.0
    %375 = vmatprep.subr.mxu0 0.0
    %376 = vmatpush1.msra.mxu0 0.0
    %377 = vmatprep.subr.mxu0 0.0
    %378 = vmatpush1.msra.mxu0 0.0
    %379 = vmatprep.subr.mxu0 0.0
    %380 = vmatpush1.msra.mxu0 0.0
    %381 = vmatprep.subr.mxu0 0.0
    %382 = vmatpush1.msra.mxu0 0.0
    %383 = vmatprep.subr.mxu0 0.0
    %384 = vmatpush1.msra.mxu0 0.0
    %385 = vmatprep.subr.mxu0 0.0
    %386 = vmatpush1.msra.mxu0 0.0
    %387 = vmatprep.subr.mxu0 0.0
    %388 = vmatpush1.msra.mxu0 0.0
    %389 = vmatprep.subr.mxu0 0.0
    %390 = vmatpush1.msra.mxu0 0.0
    %391 = vmatprep.subr.mxu0 0.0
    %392 = vmatpush1.msra.mxu0 0.0
    %393 = vmatprep.subr.mxu0 0.0
    %394 = vmatpush1.msra.mxu0 0.0
    %395 = vmatprep.subr.mxu0 0.0
    %396 = vmatpush1.msra.mxu0 0.0
    %397 = vmatprep.mubr.f32.mxu0 0.0
    %398 = vmatmul.mubr.f32.gmra.mrb[0].mxu0 %v331
    %v399 = vpop.f32.mrb[0].mxu0
    %v400 = vadd.f32 0.0, %v399
    %v401 = vpop.f32.mrb[0].mxu0
    %402 = vdwg.mxu0
    %v404 = vrot.slane %v400, 6
    %v406 = vadd.f32 %v170, %v404
    %v407 = vtanh.pop %v406
    %vm408 = vcmp.eq.s32.totalorder %v169, 2
    %v409 = vlaneseq
    %v410 = vshrl.u32 %v409, 7
    %v411 = vsub.s32 2, %v410
    %v412 = vrot.slane %v407, %v411
    %v413 = vsel %vm408, %v412, %v329
    %v415 = vrot.slane %v407, 2
    %417 = vmatprep.subr.mxu0 0.0
    %418 = vmatpush1.msra.mxu0 %v152
    %419 = vmatprep.subr.mxu0 0.0
    %420 = vmatpush1.msra.mxu0 %v153
    %421 = vmatprep.subr.mxu0 0.0
    %422 = vmatpush1.msra.mxu0 %v154
    %423 = vmatprep.subr.mxu0 0.0
    %424 = vmatpush1.msra.mxu0 %v155
    %425 = vmatprep.subr.mxu0 0.0
    %426 = vmatpush1.msra.mxu0 %v156
    %427 = vmatprep.subr.mxu0 0.0
    %428 = vmatpush1.msra.mxu0 %v157
    %429 = vmatprep.subr.mxu0 0.0
    %430 = vmatpush1.msra.mxu0 %v158
    %431 = vmatprep.subr.mxu0 0.0
    %432 = vmatpush1.msra.mxu0 %v159
    %433 = vmatprep.subr.mxu0 0.0
    %434 = vmatpush1.msra.mxu0 %v160
    %435 = vmatprep.subr.mxu0 0.0
    %436 = vmatpush1.msra.mxu0 %v161
    %437 = vmatprep.subr.mxu0 0.0
    %438 = vmatpush1.msra.mxu0 %v162
    %439 = vmatprep.subr.mxu0 0.0
    %440 = vmatpush1.msra.mxu0 %v163
    %441 = vmatprep.subr.mxu0 0.0
    %442 = vmatpush1.msra.mxu0 %v164
    %443 = vmatprep.subr.mxu0 0.0
    %444 = vmatpush1.msra.mxu0 %v165
    %445 = vmatprep.subr.mxu0 0.0
    %446 = vmatpush1.msra.mxu0 %v166
    %447 = vmatprep.subr.mxu0 0.0
    %448 = vmatpush1.msra.mxu0 %v167
    %449 = vmatprep.subr.mxu0 0.0
    %450 = vmatpush1.msra.mxu0 0.0
    %451 = vmatprep.subr.mxu0 0.0
    %452 = vmatpush1.msra.mxu0 0.0
    %453 = vmatprep.subr.mxu0 0.0
    %454 = vmatpush1.msra.mxu0 0.0
    %455 = vmatprep.subr.mxu0 0.0
    %456 = vmatpush1.msra.mxu0 0.0
    %457 = vmatprep.subr.mxu0 0.0
    %458 = vmatpush1.msra.mxu0 0.0
    %459 = vmatprep.subr.mxu0 0.0
    %460 = vmatpush1.msra.mxu0 0.0
    %461 = vmatprep.subr.mxu0 0.0
    %462 = vmatpush1.msra.mxu0 0.0
    %463 = vmatprep.subr.mxu0 0.0
    %464 = vmatpush1.msra.mxu0 0.0
    %465 = vmatprep.subr.mxu0 0.0
    %466 = vmatpush1.msra.mxu0 0.0
    %467 = vmatprep.subr.mxu0 0.0
    %468 = vmatpush1.msra.mxu0 0.0
    %469 = vmatprep.subr.mxu0 0.0
    %470 = vmatpush1.msra.mxu0 0.0
    %471 = vmatprep.subr.mxu0 0.0
    %472 = vmatpush1.msra.mxu0 0.0
    %473 = vmatprep.subr.mxu0 0.0
    %474 = vmatpush1.msra.mxu0 0.0
    %475 = vmatprep.subr.mxu0 0.0
    %476 = vmatpush1.msra.mxu0 0.0
    %477 = vmatprep.subr.mxu0 0.0
    %478 = vmatpush1.msra.mxu0 0.0
    %479 = vmatprep.subr.mxu0 0.0
    %480 = vmatpush1.msra.mxu0 0.0
    %481 = vmatprep.mubr.f32.mxu0 0.0
    %482 = vmatmul.mubr.f32.gmra.mrb[0].mxu0 %v415
    %v483 = vpop.f32.mrb[0].mxu0
    %v484 = vadd.f32 0.0, %v483
    %v485 = vpop.f32.mrb[0].mxu0
    %486 = vdwg.mxu0
    %v488 = vrot.slane %v484, 5
    %v490 = vadd.f32 %v170, %v488
    %v491 = vtanh.pop %v490
    %vm492 = vcmp.eq.s32.totalorder %v169, 3
    %v493 = vlaneseq
    %v494 = vshrl.u32 %v493, 7
    %v495 = vsub.s32 3, %v494
    %v496 = vrot.slane %v491, %v495
    %v497 = vsel %vm492, %v496, %v413
    %v499 = vrot.slane %v491, 3
    %501 = vmatprep.subr.mxu0 0.0
    %502 = vmatpush1.msra.mxu0 %v152
    %503 = vmatprep.subr.mxu0 0.0
    %504 = vmatpush1.msra.mxu0 %v153
    %505 = vmatprep.subr.mxu0 0.0
    %506 = vmatpush1.msra.mxu0 %v154
    %507 = vmatprep.subr.mxu0 0.0
    %508 = vmatpush1.msra.mxu0 %v155
    %509 = vmatprep.subr.mxu0 0.0
    %510 = vmatpush1.msra.mxu0 %v156
    %511 = vmatprep.subr.mxu0 0.0
    %512 = vmatpush1.msra.mxu0 %v157
    %513 = vmatprep.subr.mxu0 0.0
    %514 = vmatpush1.msra.mxu0 %v158
    %515 = vmatprep.subr.mxu0 0.0
    %516 = vmatpush1.msra.mxu0 %v159
    %517 = vmatprep.subr.mxu0 0.0
    %518 = vmatpush1.msra.mxu0 %v160
    %519 = vmatprep.subr.mxu0 0.0
    %520 = vmatpush1.msra.mxu0 %v161
    %521 = vmatprep.subr.mxu0 0.0
    %522 = vmatpush1.msra.mxu0 %v162
    %523 = vmatprep.subr.mxu0 0.0
    %524 = vmatpush1.msra.mxu0 %v163
    %525 = vmatprep.subr.mxu0 0.0
    %526 = vmatpush1.msra.mxu0 %v164
    %527 = vmatprep.subr.mxu0 0.0
    %528 = vmatpush1.msra.mxu0 %v165
    %529 = vmatprep.subr.mxu0 0.0
    %530 = vmatpush1.msra.mxu0 %v166
    %531 = vmatprep.subr.mxu0 0.0
    %532 = vmatpush1.msra.mxu0 %v167
    %533 = vmatprep.subr.mxu0 0.0
    %534 = vmatpush1.msra.mxu0 0.0
    %535 = vmatprep.subr.mxu0 0.0
    %536 = vmatpush1.msra.mxu0 0.0
    %537 = vmatprep.subr.mxu0 0.0
    %538 = vmatpush1.msra.mxu0 0.0
    %539 = vmatprep.subr.mxu0 0.0
    %540 = vmatpush1.msra.mxu0 0.0
    %541 = vmatprep.subr.mxu0 0.0
    %542 = vmatpush1.msra.mxu0 0.0
    %543 = vmatprep.subr.mxu0 0.0
    %544 = vmatpush1.msra.mxu0 0.0
    %545 = vmatprep.subr.mxu0 0.0
    %546 = vmatpush1.msra.mxu0 0.0
    %547 = vmatprep.subr.mxu0 0.0
    %548 = vmatpush1.msra.mxu0 0.0
    %549 = vmatprep.subr.mxu0 0.0
    %550 = vmatpush1.msra.mxu0 0.0
    %551 = vmatprep.subr.mxu0 0.0
    %552 = vmatpush1.msra.mxu0 0.0
    %553 = vmatprep.subr.mxu0 0.0
    %554 = vmatpush1.msra.mxu0 0.0
    %555 = vmatprep.subr.mxu0 0.0
    %556 = vmatpush1.msra.mxu0 0.0
    %557 = vmatprep.subr.mxu0 0.0
    %558 = vmatpush1.msra.mxu0 0.0
    %559 = vmatprep.subr.mxu0 0.0
    %560 = vmatpush1.msra.mxu0 0.0
    %561 = vmatprep.subr.mxu0 0.0
    %562 = vmatpush1.msra.mxu0 0.0
    %563 = vmatprep.subr.mxu0 0.0
    %564 = vmatpush1.msra.mxu0 0.0
    %565 = vmatprep.mubr.f32.mxu0 0.0
    %566 = vmatmul.mubr.f32.gmra.mrb[0].mxu0 %v499
    %v567 = vpop.f32.mrb[0].mxu0
    %v568 = vadd.f32 0.0, %v567
    %v569 = vpop.f32.mrb[0].mxu0
    %570 = vdwg.mxu0
    %v572 = vrot.slane %v568, 4
    %v574 = vadd.f32 %v170, %v572
    %v575 = vtanh.pop %v574
    %vm576 = vcmp.eq.s32.totalorder %v169, 4
    %v577 = vlaneseq
    %v578 = vshrl.u32 %v577, 7
    %v579 = vsub.s32 4, %v578
    %v580 = vrot.slane %v575, %v579
    %v581 = vsel %vm576, %v580, %v497
    %v583 = vrot.slane %v575, 4
    %585 = vmatprep.subr.mxu0 0.0
    %586 = vmatpush1.msra.mxu0 %v152
    %587 = vmatprep.subr.mxu0 0.0
    %588 = vmatpush1.msra.mxu0 %v153
    %589 = vmatprep.subr.mxu0 0.0
    %590 = vmatpush1.msra.mxu0 %v154
    %591 = vmatprep.subr.mxu0 0.0
    %592 = vmatpush1.msra.mxu0 %v155
    %593 = vmatprep.subr.mxu0 0.0
    %594 = vmatpush1.msra.mxu0 %v156
    %595 = vmatprep.subr.mxu0 0.0
    %596 = vmatpush1.msra.mxu0 %v157
    %597 = vmatprep.subr.mxu0 0.0
    %598 = vmatpush1.msra.mxu0 %v158
    %599 = vmatprep.subr.mxu0 0.0
    %600 = vmatpush1.msra.mxu0 %v159
    %601 = vmatprep.subr.mxu0 0.0
    %602 = vmatpush1.msra.mxu0 %v160
    %603 = vmatprep.subr.mxu0 0.0
    %604 = vmatpush1.msra.mxu0 %v161
    %605 = vmatprep.subr.mxu0 0.0
    %606 = vmatpush1.msra.mxu0 %v162
    %607 = vmatprep.subr.mxu0 0.0
    %608 = vmatpush1.msra.mxu0 %v163
    %609 = vmatprep.subr.mxu0 0.0
    %610 = vmatpush1.msra.mxu0 %v164
    %611 = vmatprep.subr.mxu0 0.0
    %612 = vmatpush1.msra.mxu0 %v165
    %613 = vmatprep.subr.mxu0 0.0
    %614 = vmatpush1.msra.mxu0 %v166
    %615 = vmatprep.subr.mxu0 0.0
    %616 = vmatpush1.msra.mxu0 %v167
    %617 = vmatprep.subr.mxu0 0.0
    %618 = vmatpush1.msra.mxu0 0.0
    %619 = vmatprep.subr.mxu0 0.0
    %620 = vmatpush1.msra.mxu0 0.0
    %621 = vmatprep.subr.mxu0 0.0
    %622 = vmatpush1.msra.mxu0 0.0
    %623 = vmatprep.subr.mxu0 0.0
    %624 = vmatpush1.msra.mxu0 0.0
    %625 = vmatprep.subr.mxu0 0.0
    %626 = vmatpush1.msra.mxu0 0.0
    %627 = vmatprep.subr.mxu0 0.0
    %628 = vmatpush1.msra.mxu0 0.0
    %629 = vmatprep.subr.mxu0 0.0
    %630 = vmatpush1.msra.mxu0 0.0
    %631 = vmatprep.subr.mxu0 0.0
    %632 = vmatpush1.msra.mxu0 0.0
    %633 = vmatprep.subr.mxu0 0.0
    %634 = vmatpush1.msra.mxu0 0.0
    %635 = vmatprep.subr.mxu0 0.0
    %636 = vmatpush1.msra.mxu0 0.0
    %637 = vmatprep.subr.mxu0 0.0
    %638 = vmatpush1.msra.mxu0 0.0
    %639 = vmatprep.subr.mxu0 0.0
    %640 = vmatpush1.msra.mxu0 0.0
    %641 = vmatprep.subr.mxu0 0.0
    %642 = vmatpush1.msra.mxu0 0.0
    %643 = vmatprep.subr.mxu0 0.0
    %644 = vmatpush1.msra.mxu0 0.0
    %645 = vmatprep.subr.mxu0 0.0
    %646 = vmatpush1.msra.mxu0 0.0
    %647 = vmatprep.subr.mxu0 0.0
    %648 = vmatpush1.msra.mxu0 0.0
    %649 = vmatprep.mubr.f32.mxu0 0.0
    %650 = vmatmul.mubr.f32.gmra.mrb[0].mxu0 %v583
    %v651 = vpop.f32.mrb[0].mxu0
    %v652 = vadd.f32 0.0, %v651
    %v653 = vpop.f32.mrb[0].mxu0
    %654 = vdwg.mxu0
    %v656 = vrot.slane %v652, 3
    %v658 = vadd.f32 %v170, %v656
    %v659 = vtanh.pop %v658
    %vm660 = vcmp.eq.s32.totalorder %v169, 5
    %v661 = vlaneseq
    %v662 = vshrl.u32 %v661, 7
    %v663 = vsub.s32 5, %v662
    %v664 = vrot.slane %v659, %v663
    %v665 = vsel %vm660, %v664, %v581
    %v667 = vrot.slane %v659, 5
    %669 = vmatprep.subr.mxu0 0.0
    %670 = vmatpush1.msra.mxu0 %v152
    %671 = vmatprep.subr.mxu0 0.0
    %672 = vmatpush1.msra.mxu0 %v153
    %673 = vmatprep.subr.mxu0 0.0
    %674 = vmatpush1.msra.mxu0 %v154
    %675 = vmatprep.subr.mxu0 0.0
    %676 = vmatpush1.msra.mxu0 %v155
    %677 = vmatprep.subr.mxu0 0.0
    %678 = vmatpush1.msra.mxu0 %v156
    %679 = vmatprep.subr.mxu0 0.0
    %680 = vmatpush1.msra.mxu0 %v157
    %681 = vmatprep.subr.mxu0 0.0
    %682 = vmatpush1.msra.mxu0 %v158
    %683 = vmatprep.subr.mxu0 0.0
    %684 = vmatpush1.msra.mxu0 %v159
    %685 = vmatprep.subr.mxu0 0.0
    %686 = vmatpush1.msra.mxu0 %v160
    %687 = vmatprep.subr.mxu0 0.0
    %688 = vmatpush1.msra.mxu0 %v161
    %689 = vmatprep.subr.mxu0 0.0
    %690 = vmatpush1.msra.mxu0 %v162
    %691 = vmatprep.subr.mxu0 0.0
    %692 = vmatpush1.msra.mxu0 %v163
    %693 = vmatprep.subr.mxu0 0.0
    %694 = vmatpush1.msra.mxu0 %v164
    %695 = vmatprep.subr.mxu0 0.0
    %696 = vmatpush1.msra.mxu0 %v165
    %697 = vmatprep.subr.mxu0 0.0
    %698 = vmatpush1.msra.mxu0 %v166
    %699 = vmatprep.subr.mxu0 0.0
    %700 = vmatpush1.msra.mxu0 %v167
    %701 = vmatprep.subr.mxu0 0.0
    %702 = vmatpush1.msra.mxu0 0.0
    %703 = vmatprep.subr.mxu0 0.0
    %704 = vmatpush1.msra.mxu0 0.0
    %705 = vmatprep.subr.mxu0 0.0
    %706 = vmatpush1.msra.mxu0 0.0
    %707 = vmatprep.subr.mxu0 0.0
    %708 = vmatpush1.msra.mxu0 0.0
    %709 = vmatprep.subr.mxu0 0.0
    %710 = vmatpush1.msra.mxu0 0.0
    %711 = vmatprep.subr.mxu0 0.0
    %712 = vmatpush1.msra.mxu0 0.0
    %713 = vmatprep.subr.mxu0 0.0
    %714 = vmatpush1.msra.mxu0 0.0
    %715 = vmatprep.subr.mxu0 0.0
    %716 = vmatpush1.msra.mxu0 0.0
    %717 = vmatprep.subr.mxu0 0.0
    %718 = vmatpush1.msra.mxu0 0.0
    %719 = vmatprep.subr.mxu0 0.0
    %720 = vmatpush1.msra.mxu0 0.0
    %721 = vmatprep.subr.mxu0 0.0
    %722 = vmatpush1.msra.mxu0 0.0
    %723 = vmatprep.subr.mxu0 0.0
    %724 = vmatpush1.msra.mxu0 0.0
    %725 = vmatprep.subr.mxu0 0.0
    %726 = vmatpush1.msra.mxu0 0.0
    %727 = vmatprep.subr.mxu0 0.0
    %728 = vmatpush1.msra.mxu0 0.0
    %729 = vmatprep.subr.mxu0 0.0
    %730 = vmatpush1.msra.mxu0 0.0
    %731 = vmatprep.subr.mxu0 0.0
    %732 = vmatpush1.msra.mxu0 0.0
    %733 = vmatprep.mubr.f32.mxu0 0.0
    %734 = vmatmul.mubr.f32.gmra.mrb[0].mxu0 %v667
    %v735 = vpop.f32.mrb[0].mxu0
    %v736 = vadd.f32 0.0, %v735
    %v737 = vpop.f32.mrb[0].mxu0
    %738 = vdwg.mxu0
    %v740 = vrot.slane %v736, 2
    %v742 = vadd.f32 %v170, %v740
    %v743 = vtanh.pop %v742
    %vm744 = vcmp.eq.s32.totalorder %v169, 6
    %v745 = vlaneseq
    %v746 = vshrl.u32 %v745, 7
    %v747 = vsub.s32 6, %v746
    %v748 = vrot.slane %v743, %v747
    %v749 = vsel %vm744, %v748, %v665
    %v751 = vrot.slane %v743, 6
    %753 = vmatprep.subr.mxu0 0.0
    %754 = vmatpush1.msra.mxu0 %v152
    %755 = vmatprep.subr.mxu0 0.0
    %756 = vmatpush1.msra.mxu0 %v153
    %757 = vmatprep.subr.mxu0 0.0
    %758 = vmatpush1.msra.mxu0 %v154
    %759 = vmatprep.subr.mxu0 0.0
    %760 = vmatpush1.msra.mxu0 %v155
    %761 = vmatprep.subr.mxu0 0.0
    %762 = vmatpush1.msra.mxu0 %v156
    %763 = vmatprep.subr.mxu0 0.0
    %764 = vmatpush1.msra.mxu0 %v157
    %765 = vmatprep.subr.mxu0 0.0
    %766 = vmatpush1.msra.mxu0 %v158
    %767 = vmatprep.subr.mxu0 0.0
    %768 = vmatpush1.msra.mxu0 %v159
    %769 = vmatprep.subr.mxu0 0.0
    %770 = vmatpush1.msra.mxu0 %v160
    %771 = vmatprep.subr.mxu0 0.0
    %772 = vmatpush1.msra.mxu0 %v161
    %773 = vmatprep.subr.mxu0 0.0
    %774 = vmatpush1.msra.mxu0 %v162
    %775 = vmatprep.subr.mxu0 0.0
    %776 = vmatpush1.msra.mxu0 %v163
    %777 = vmatprep.subr.mxu0 0.0
    %778 = vmatpush1.msra.mxu0 %v164
    %779 = vmatprep.subr.mxu0 0.0
    %780 = vmatpush1.msra.mxu0 %v165
    %781 = vmatprep.subr.mxu0 0.0
    %782 = vmatpush1.msra.mxu0 %v166
    %783 = vmatprep.subr.mxu0 0.0
    %784 = vmatpush1.msra.mxu0 %v167
    %785 = vmatprep.subr.mxu0 0.0
    %786 = vmatpush1.msra.mxu0 0.0
    %787 = vmatprep.subr.mxu0 0.0
    %788 = vmatpush1.msra.mxu0 0.0
    %789 = vmatprep.subr.mxu0 0.0
    %790 = vmatpush1.msra.mxu0 0.0
    %791 = vmatprep.subr.mxu0 0.0
    %792 = vmatpush1.msra.mxu0 0.0
    %793 = vmatprep.subr.mxu0 0.0
    %794 = vmatpush1.msra.mxu0 0.0
    %795 = vmatprep.subr.mxu0 0.0
    %796 = vmatpush1.msra.mxu0 0.0
    %797 = vmatprep.subr.mxu0 0.0
    %798 = vmatpush1.msra.mxu0 0.0
    %799 = vmatprep.subr.mxu0 0.0
    %800 = vmatpush1.msra.mxu0 0.0
    %801 = vmatprep.subr.mxu0 0.0
    %802 = vmatpush1.msra.mxu0 0.0
    %803 = vmatprep.subr.mxu0 0.0
    %804 = vmatpush1.msra.mxu0 0.0
    %805 = vmatprep.subr.mxu0 0.0
    %806 = vmatpush1.msra.mxu0 0.0
    %807 = vmatprep.subr.mxu0 0.0
    %808 = vmatpush1.msra.mxu0 0.0
    %809 = vmatprep.subr.mxu0 0.0
    %810 = vmatpush1.msra.mxu0 0.0
    %811 = vmatprep.subr.mxu0 0.0
    %812 = vmatpush1.msra.mxu0 0.0
    %813 = vmatprep.subr.mxu0 0.0
    %814 = vmatpush1.msra.mxu0 0.0
    %815 = vmatprep.subr.mxu0 0.0
    %816 = vmatpush1.msra.mxu0 0.0
    %817 = vmatprep.mubr.f32.mxu0 0.0
    %818 = vmatmul.mubr.f32.gmra.mrb[0].mxu0 %v751
    %v819 = vpop.f32.mrb[0].mxu0
    %v820 = vadd.f32 0.0, %v819
    %v821 = vpop.f32.mrb[0].mxu0
    %822 = vdwg.mxu0
    %v824 = vrot.slane %v820, 1
    %v826 = vadd.f32 %v170, %v824
    %v827 = vtanh.pop %v826
    %vm828 = vcmp.eq.s32.totalorder %v169, 7
    %v829 = vlaneseq
    %v830 = vshrl.u32 %v829, 7
    %v831 = vsub.s32 7, %v830
    %v832 = vrot.slane %v827, %v831
    %v833 = vsel %vm828, %v832, %v749
    %834 = vst [vmem:[#allocation8] sm:$0xff] %v833
    // Predicated region
    $region30: #{tpu_custom_call.1} parent=1 // pred_check
      _
    $region31: #{tpu_custom_call.1} parent=1 // pred_check_branch
      %836 = sbr.rel (0) target = $region33
    $region32: #{tpu_custom_call.1} parent=1 // pred_region
      %s838 = ssub.s32 128, 128
      %839 = vsyncadd [#allocation4], %s838
      %s841 = sshll.u32 [#allocation8], 4
      %s842 = int_to_ptr.vmem [resolvable:$true] %s841
      %844 = dma.vmem_to_hbm [thread:$0]  %s842, 128, %s4, [#allocation4]
    $region33: #{tpu_custom_call.1} parent=1 // pred_fallthru
      _
    // Predicated region
    $region34: #{tpu_custom_call.1} parent=1 // pred_check
      _
    $region35: #{tpu_custom_call.1} parent=1 // pred_check_branch
      %846 = sbr.rel (0) target = $region37
    $region36: #{tpu_custom_call.1} parent=1 // pred_region
      %847 = dma.done [#allocation4], 128
    $region37: #{tpu_custom_call.1} parent=1 // pred_fallthru
      _
    %848 = vsyncpa [#allocation3], 1
    %849 = vsyncpa [#allocation6], 1
    %850 = vsyncpa [#allocation4], 1

</llo_original>
